<compile_context>
chip_gen: v5e
topology: v5e:2x2
jax: 0.10.0
libtpu: 0.0.40
codegen_flags: <defaults>
</compile_context>

<pallas_src>
import jax
import jax.numpy as jnp
from jax.experimental import pallas as pl
from jax.experimental.pallas import tpu as pltpu

# CartPole-v0 dimensions
S_SIZE = 4    # env.observation_space.shape[0]
H_SIZE = 16   # h_size
A_SIZE = 2    # env.action_space.n

# Packed-parameter column layout inside the single (H_SIZE, 8) tile:
#   cols [0:4)  -> W1  (torch layout, (H, S))
#   col   4     -> b1  ((H, 1))
#   cols [5:7)  -> W2^T ((H, A))
#   col   7     -> b2 padded into the first A_SIZE rows
_COL_B1 = S_SIZE                   # 4
_COL_W2 = S_SIZE + 1               # 5
_COL_B2 = S_SIZE + 1 + A_SIZE      # 7
_P_COLS = S_SIZE + 1 + A_SIZE + 1  # 8

MIN_BLOCK_B = 128    # lane width granularity
MAX_BLOCK_B = 1024   # cap on states per grid step


def agent_kernel(p_ref, x_ref, out_ref):
    # p_ref:   (H_SIZE, 8)       packed params (resident across the grid)
    # x_ref:   (S_SIZE, block_b) states, batch on lanes
    # out_ref: (1, block_b)      int32 actions (lane-dense store)
    w1 = p_ref[:, 0:S_SIZE]                    # (H, S)  torch layout
    b1 = p_ref[:, _COL_B1:_COL_B1 + 1]         # (H, 1)
    w2t = p_ref[:, _COL_W2:_COL_W2 + A_SIZE]   # (H, A)
    b2_0 = p_ref[0:1, _COL_B2:_COL_B2 + 1]     # (1, 1)
    b2_1 = p_ref[1:2, _COL_B2:_COL_B2 + 1]     # (1, 1)

    xt = x_ref[...]                            # (S, TB)

    # lin1 + ReLU as S=4 rank-1 VPU updates (no MXU for a 4x16 weight).
    acc = w1[:, 0:1] * xt[0:1, :] + b1         # (H, TB)
    for s in range(1, S_SIZE):                 # static unroll, S_SIZE=4
        acc = acc + w1[:, s:s + 1] * xt[s:s + 1, :]
    h = jnp.maximum(acc, 0.0)                  # (H, TB)

    # lin2 logits. tanh dropped: strictly monotonic => argmax-invariant.
    y0 = jnp.sum(h * w2t[:, 0:1], axis=0, keepdims=True) + b2_0   # (1, TB)
    y1 = jnp.sum(h * w2t[:, 1:2], axis=0, keepdims=True) + b2_1   # (1, TB)

    # argmax over the 2 logits, torch first-occurrence tie-break (ties -> 0).
    out_ref[...] = jnp.where(y1 > y0, jnp.int32(1), jnp.int32(0))


def pack_params(w1, b1, w2, b2):
    """Pack torch-layout params into a single (H_SIZE, 8) f32 tile.

    w1: (H, S), b1: (H,), w2: (A, H), b2: (A,)  -- same layout as nn.Linear.
    """
    b2_col = jnp.zeros((H_SIZE, 1), jnp.float32).at[:A_SIZE, 0].set(b2)
    return jnp.concatenate(
        [w1.astype(jnp.float32),
         b1.reshape(H_SIZE, 1).astype(jnp.float32),
         jnp.transpose(w2).astype(jnp.float32),
         b2_col],
        axis=1,
    )  # (16, 8)


def _pick_block_b(batch):
    """Round batch up to a lane multiple, capped so one step handles <=1024."""
    padded = pl.cdiv(batch, MIN_BLOCK_B) * MIN_BLOCK_B
    return min(padded, MAX_BLOCK_B)


def agent_forward_batch(x, w1, b1, w2, b2, *, block_b=None):
    """x: (B, S) float32 states -> (B,) int32 actions."""
    B = x.shape[0]
    if block_b is None:
        block_b = _pick_block_b(B)
    nb = pl.cdiv(B, block_b)
    bp = nb * block_b

    params = pack_params(w1, b1, w2, b2)                      # (16, 8)
    # batch-on-lanes layout, zero-padded to a multiple of block_b
    xt = jnp.zeros((S_SIZE, bp), jnp.float32).at[:, :B].set(x.T)

    out = pl.pallas_call(
        agent_kernel,
        out_shape=jax.ShapeDtypeStruct((1, bp), jnp.int32),
        grid_spec=pltpu.PrefetchScalarGridSpec(
            num_scalar_prefetch=0,
            grid=(nb,),
            in_specs=[
                # params: constant block index -> DMA'd once, stays resident
                pl.BlockSpec((H_SIZE, _P_COLS), lambda i: (0, 0)),
                # states: one block_b-wide lane block per grid step
                pl.BlockSpec((S_SIZE, block_b), lambda i: (0, i)),
            ],
            out_specs=pl.BlockSpec((1, block_b), lambda i: (0, i)),
        ),
        compiler_params=pltpu.CompilerParams(
            dimension_semantics=("parallel",),  # v7x: split batch across TCs
        ),
    )(params, xt)
    return out[0, :B]


def agent_forward(state, w1, b1, w2, b2):
    """Original module semantics: a single state -> scalar int32 action."""
    return agent_forward_batch(state.reshape(1, S_SIZE), w1, b1, w2, b2)[0]


def init_params(key):
    """nn.Linear-style init (uniform +-1/sqrt(fan_in)), torch layouts."""
    k1, k2, k3, k4 = jax.random.split(key, 4)
    lim1 = 1.0 / jnp.sqrt(jnp.float32(S_SIZE))
    lim2 = 1.0 / jnp.sqrt(jnp.float32(H_SIZE))
    w1 = jax.random.uniform(k1, (H_SIZE, S_SIZE), jnp.float32, -lim1, lim1)
    b1 = jax.random.uniform(k2, (H_SIZE,), jnp.float32, -lim1, lim1)
    w2 = jax.random.uniform(k3, (A_SIZE, H_SIZE), jnp.float32, -lim2, lim2)
    b2 = jax.random.uniform(k4, (A_SIZE,), jnp.float32, -lim2, lim2)
    return w1, b1, w2, b2


def reference_forward_batch(x, w1, b1, w2, b2):
    """Pure-JAX reference matching the PyTorch module exactly (incl. tanh)."""
    h = jnp.maximum(x @ w1.T + b1, 0.0)
    y = jnp.tanh(h @ w2.T + b2)
    return jnp.argmax(y, axis=-1).astype(jnp.int32)


if __name__ == "__main__":
    key = jax.random.PRNGKey(0)
    kx, kp = jax.random.split(key)

    # A small batch of CartPole states (e.g. one CEM rollout chunk).
    B = 256
    x = jax.random.normal(kx, (B, S_SIZE), jnp.float32)
    w1, b1, w2, b2 = init_params(kp)

    actions = agent_forward_batch(x, w1, b1, w2, b2)
    jax.block_until_ready(actions)

    ref = reference_forward_batch(x, w1, b1, w2, b2)
    assert bool(jnp.array_equal(actions, ref)), (actions, ref)

    # Non-multiple-of-128 batch exercises the padding path.
    B2 = 300
    x2 = jax.random.normal(jax.random.PRNGKey(3), (B2, S_SIZE), jnp.float32)
    a2 = agent_forward_batch(x2, w1, b1, w2, b2)
    jax.block_until_ready(a2)
    assert bool(jnp.array_equal(a2, reference_forward_batch(x2, w1, b1, w2, b2)))

    # Single-state path, matching the original module.forward(state).
    a0 = agent_forward(x[0], w1, b1, w2, b2)
    jax.block_until_ready(a0)
    assert int(a0) == int(ref[0]), (int(a0), int(ref[0]))

    print("KERNEL_OK")
</pallas_src>

<mosaic_0001>
module attributes {stable_mosaic.version = 11 : i64} {
  func.func @agent_kernel(%arg0: i32, %arg1: memref<16x8xf32, #tpu.memory_space<vmem>>, %arg2: memref<4x256xf32, #tpu.memory_space<vmem>>, %arg3: memref<1x256xi32, #tpu.memory_space<vmem>>) attributes {dimension_semantics = [#tpu.dimension_semantics<parallel>], iteration_bounds = array<i64: 1>, scalar_prefetch = 0 : i64, scratch_operands = 0 : i64, tpu.core_type = #tpu.core_type<tc>, window_params = [{pipeline_mode = #tpu.pipeline_mode<synchronous>, transform_indices = @transform_0, window_bounds = array<i64: 16, 8>}, {transform_indices = @transform_1, window_bounds = array<i64: 4, 256>}, {transform_indices = @transform_2, window_bounds = array<i64: 1, 256>}]} {
    %c0 = arith.constant 0 : index
    %c0_0 = arith.constant 0 : index
    %0 = vector.load %arg1[%c0, %c0_0] : memref<16x8xf32, #tpu.memory_space<vmem>>, vector<16x4xf32>
    %c0_1 = arith.constant 0 : index
    %c4 = arith.constant 4 : index
    %1 = vector.load %arg1[%c0_1, %c4] : memref<16x8xf32, #tpu.memory_space<vmem>>, vector<16x1xf32>
    %c0_2 = arith.constant 0 : index
    %c5 = arith.constant 5 : index
    %2 = vector.load %arg1[%c0_2, %c5] : memref<16x8xf32, #tpu.memory_space<vmem>>, vector<16x2xf32>
    %c0_3 = arith.constant 0 : index
    %c7 = arith.constant 7 : index
    %3 = vector.load %arg1[%c0_3, %c7] : memref<16x8xf32, #tpu.memory_space<vmem>>, vector<1x1xf32>
    %c1 = arith.constant 1 : index
    %c7_4 = arith.constant 7 : index
    %4 = vector.load %arg1[%c1, %c7_4] : memref<16x8xf32, #tpu.memory_space<vmem>>, vector<1x1xf32>
    %c0_5 = arith.constant 0 : index
    %c0_6 = arith.constant 0 : index
    %5 = vector.load %arg2[%c0_5, %c0_6] : memref<4x256xf32, #tpu.memory_space<vmem>>, vector<4x256xf32>
    %6 = vector.extract_strided_slice %0 {offsets = [0, 0], sizes = [16, 1], strides = [1, 1]} : vector<16x4xf32> to vector<16x1xf32>
    %7 = vector.extract_strided_slice %5 {offsets = [0, 0], sizes = [1, 256], strides = [1, 1]} : vector<4x256xf32> to vector<1x256xf32>
    %8 = vector.broadcast %6 : vector<16x1xf32> to vector<16x256xf32>
    %9 = vector.broadcast %7 : vector<1x256xf32> to vector<16x256xf32>
    %10 = arith.mulf %8, %9 : vector<16x256xf32>
    %11 = vector.broadcast %1 : vector<16x1xf32> to vector<16x256xf32>
    %12 = arith.addf %10, %11 : vector<16x256xf32>
    %13 = vector.extract_strided_slice %0 {offsets = [0, 1], sizes = [16, 1], strides = [1, 1]} : vector<16x4xf32> to vector<16x1xf32>
    %14 = vector.extract_strided_slice %5 {offsets = [1, 0], sizes = [1, 256], strides = [1, 1]} : vector<4x256xf32> to vector<1x256xf32>
    %15 = vector.broadcast %13 : vector<16x1xf32> to vector<16x256xf32>
    %16 = vector.broadcast %14 : vector<1x256xf32> to vector<16x256xf32>
    %17 = arith.mulf %15, %16 : vector<16x256xf32>
    %18 = arith.addf %12, %17 : vector<16x256xf32>
    %19 = vector.extract_strided_slice %0 {offsets = [0, 2], sizes = [16, 1], strides = [1, 1]} : vector<16x4xf32> to vector<16x1xf32>
    %20 = vector.extract_strided_slice %5 {offsets = [2, 0], sizes = [1, 256], strides = [1, 1]} : vector<4x256xf32> to vector<1x256xf32>
    %21 = vector.broadcast %19 : vector<16x1xf32> to vector<16x256xf32>
    %22 = vector.broadcast %20 : vector<1x256xf32> to vector<16x256xf32>
    %23 = arith.mulf %21, %22 : vector<16x256xf32>
    %24 = arith.addf %18, %23 : vector<16x256xf32>
    %25 = vector.extract_strided_slice %0 {offsets = [0, 3], sizes = [16, 1], strides = [1, 1]} : vector<16x4xf32> to vector<16x1xf32>
    %26 = vector.extract_strided_slice %5 {offsets = [3, 0], sizes = [1, 256], strides = [1, 1]} : vector<4x256xf32> to vector<1x256xf32>
    %27 = vector.broadcast %25 : vector<16x1xf32> to vector<16x256xf32>
    %28 = vector.broadcast %26 : vector<1x256xf32> to vector<16x256xf32>
    %29 = arith.mulf %27, %28 : vector<16x256xf32>
    %30 = arith.addf %24, %29 : vector<16x256xf32>
    %cst = arith.constant 0.000000e+00 : f32
    %31 = vector.broadcast %cst : f32 to vector<16x256xf32>
    %32 = arith.maximumf %30, %31 : vector<16x256xf32>
    %33 = vector.extract_strided_slice %2 {offsets = [0, 0], sizes = [16, 1], strides = [1, 1]} : vector<16x2xf32> to vector<16x1xf32>
    %34 = vector.broadcast %33 : vector<16x1xf32> to vector<16x256xf32>
    %35 = arith.mulf %32, %34 : vector<16x256xf32>
    %cst_7 = arith.constant dense<0.000000e+00> : vector<256xf32>
    %36 = vector.multi_reduction <add>, %35, %cst_7 [0] : vector<16x256xf32> to vector<256xf32>
    %37 = vector.shape_cast %36 : vector<256xf32> to vector<1x256xf32>
    %38 = vector.broadcast %3 : vector<1x1xf32> to vector<1x256xf32>
    %39 = arith.addf %37, %38 : vector<1x256xf32>
    %40 = vector.extract_strided_slice %2 {offsets = [0, 1], sizes = [16, 1], strides = [1, 1]} : vector<16x2xf32> to vector<16x1xf32>
    %41 = vector.broadcast %40 : vector<16x1xf32> to vector<16x256xf32>
    %42 = arith.mulf %32, %41 : vector<16x256xf32>
    %cst_8 = arith.constant dense<0.000000e+00> : vector<256xf32>
    %43 = vector.multi_reduction <add>, %42, %cst_8 [0] : vector<16x256xf32> to vector<256xf32>
    %44 = vector.shape_cast %43 : vector<256xf32> to vector<1x256xf32>
    %45 = vector.broadcast %4 : vector<1x1xf32> to vector<1x256xf32>
    %46 = arith.addf %44, %45 : vector<1x256xf32>
    %47 = arith.cmpf ogt, %46, %39 : vector<1x256xf32>
    %c1_i32 = arith.constant 1 : i32
    %c0_i32 = arith.constant 0 : i32
    %48 = vector.broadcast %c1_i32 : i32 to vector<1x256xi32>
    %49 = vector.broadcast %c0_i32 : i32 to vector<1x256xi32>
    %50 = arith.select %47, %48, %49 : vector<1x256xi1>, vector<1x256xi32>
    %c0_9 = arith.constant 0 : index
    %c0_10 = arith.constant 0 : index
    %51 = vector.load %arg3[%c0_9, %c0_10] : memref<1x256xi32, #tpu.memory_space<vmem>>, vector<1x256xi32>
    tpu.vector_store %arg3[%c0_9, %c0_10], %50 {strides = array<i32>} : memref<1x256xi32, #tpu.memory_space<vmem>>, vector<1x256xi32>,
    return
  }
  func.func @transform_0(%arg0: i32) -> (i32, i32) {
    %c0_i32 = arith.constant 0 : i32
    %c0_i32_0 = arith.constant 0 : i32
    %c0_i32_1 = arith.constant 0 : i32
    return %c0_i32, %c0_i32_0 : i32, i32
  }
  func.func @transform_1(%arg0: i32) -> (i32, i32) {
    %c0_i32 = arith.constant 0 : i32
    %c0_i32_0 = arith.constant 0 : i32
    return %c0_i32, %arg0 : i32, i32
  }
  func.func @transform_2(%arg0: i32) -> (i32, i32) {
    %c0_i32 = arith.constant 0 : i32
    %c0_i32_0 = arith.constant 0 : i32
    return %c0_i32, %arg0 : i32, i32
  }
}

</mosaic_0001>

<llo_original>
// kernel: tpu_custom_call.1
$region0: #{tpu_custom_call.1}
  #allocation0 [shape = 'u32[]', space=smem, size = 0x4, offset = 0x4, fixed_abs, tag = 'smem constant byte address 0x4 - core index']
  #allocation1 [shape = 'u32[72,128]{1,0:T(1,128)}', space=vmem, size = 0x9000, scoped, tag = 'internal scratch']
  %s0 = inlined_call_operand.vmem [shape: f32[16,8], index: 0, kind: input, shape index: {}]
  %s1 = inlined_call_operand.vmem [shape: f32[4,256], index: 1, kind: input, shape index: {}]
  %s2 = inlined_call_operand.hbm [shape: s32[1,256], index: 2, kind: output, shape index: {}]
  %s3 = sld [smem:[#allocation0]]
  $region18: #{tpu_custom_call.1} parent=0
    _
  %s5 = ssub.s32 1, %s3
  %s6 = scalar_select 0, %s5, %s3
  $region1: #{tpu_custom_call.1} parent=0
    #allocation2 [shape = 'u8[1024]{0}', space=vmem, size = 0x400, scoped, tag = 'output window, operand 0, single buffered']
    #allocation3 [shape = 's32[1]{0}', space=sflag, size = 0x4, scoped, tag = 'scoped memory for tpu_custom_call.1']
    %7 = vsyncpa [#allocation3], 0
    // Predicated region
    $region2: #{tpu_custom_call.1} parent=1 // pred_check
      _
    $region3: #{tpu_custom_call.1} parent=1 // pred_check_branch
      %9 = sbr.rel (0) target = $region5
    $region4: #{tpu_custom_call.1} parent=1 // pred_region
      _
    $region5: #{tpu_custom_call.1} parent=1 // pred_fallthru
      _
    // Predicated region
    $region6: #{tpu_custom_call.1} parent=1 // pred_check
      _
    $region7: #{tpu_custom_call.1} parent=1 // pred_check_branch
      %11 = sbr.rel (0) target = $region9
    $region8: #{tpu_custom_call.1} parent=1 // pred_region
      _
    $region9: #{tpu_custom_call.1} parent=1 // pred_fallthru
      _
    %v12 = vld [vmem:[%s0] sm:$0xff]
    %v13 = vld [vmem:[%s0 + $0x8] sm:$0xff]
    %v14 = vld [vmem:[%s0] sm:$0x1]
    %v15 = vld [vmem:[%s0 + $0x1] sm:$0x1]
    %v16 = vld [vmem:[%s1] sm:$0xff]
    %18 = vset.pattern.permute.xlu0 0
    %19 = vperm.xlu0 %18, %v12
    %v20 = vpop.permute.xlu0 %19
    %23 = vset.pattern.permute.xlu0 0
    %24 = vperm.xlu0 %23, %v13
    %v25 = vpop.permute.xlu0 %24
    %v28 = vperm.slane %v16, 0
    %v29 = vperm.slane %v16, 4
    %v32 = vperm.slane %v28, 0
    %v33 = vperm.slane %v29, 0
    %v34 = vmul.f32 %v20, %v32
    %v35 = vmul.f32 %v20, %v33
    %v36 = vmul.f32 %v25, %v32
    %v37 = vmul.f32 %v25, %v33
    %38 = vset.pattern.permute.xlu0 4
    %39 = vperm.xlu0 %38, %v12
    %v40 = vpop.permute.xlu0 %39
    %42 = vset.pattern.permute.xlu0 4
    %43 = vperm.xlu0 %42, %v13
    %v44 = vpop.permute.xlu0 %43
    %v46 = vadd.f32 %v34, %v40
    %v47 = vadd.f32 %v35, %v40
    %v48 = vadd.f32 %v36, %v44
    %v49 = vadd.f32 %v37, %v44
    %50 = vset.pattern.permute.xlu0 1
    %51 = vperm.xlu0 %50, %v12
    %v52 = vpop.permute.xlu0 %51
    %54 = vset.pattern.permute.xlu0 1
    %55 = vperm.xlu0 %54, %v13
    %v56 = vpop.permute.xlu0 %55
    %v58 = vperm.slane %v16, 1
    %v59 = vperm.slane %v16, 5
    %v62 = vperm.slane %v58, 1
    %v63 = vperm.slane %v59, 1
    %v64 = vmul.f32 %v52, %v62
    %v65 = vmul.f32 %v52, %v63
    %v66 = vmul.f32 %v56, %v62
    %v67 = vmul.f32 %v56, %v63
    %v68 = vadd.f32 %v46, %v64
    %v69 = vadd.f32 %v47, %v65
    %v70 = vadd.f32 %v48, %v66
    %v71 = vadd.f32 %v49, %v67
    %72 = vset.pattern.permute.xlu0 2
    %73 = vperm.xlu0 %72, %v12
    %v74 = vpop.permute.xlu0 %73
    %76 = vset.pattern.permute.xlu0 2
    %77 = vperm.xlu0 %76, %v13
    %v78 = vpop.permute.xlu0 %77
    %v80 = vperm.slane %v16, 2
    %v81 = vperm.slane %v16, 6
    %v84 = vperm.slane %v80, 2
    %v85 = vperm.slane %v81, 2
    %v86 = vmul.f32 %v74, %v84
    %v87 = vmul.f32 %v74, %v85
    %v88 = vmul.f32 %v78, %v84
    %v89 = vmul.f32 %v78, %v85
    %v90 = vadd.f32 %v68, %v86
    %v91 = vadd.f32 %v69, %v87
    %v92 = vadd.f32 %v70, %v88
    %v93 = vadd.f32 %v71, %v89
    %94 = vset.pattern.permute.xlu0 3
    %95 = vperm.xlu0 %94, %v12
    %v96 = vpop.permute.xlu0 %95
    %98 = vset.pattern.permute.xlu0 3
    %99 = vperm.xlu0 %98, %v13
    %v100 = vpop.permute.xlu0 %99
    %v102 = vperm.slane %v16, 3
    %v103 = vperm.slane %v16, 7
    %v106 = vperm.slane %v102, 3
    %v107 = vperm.slane %v103, 3
    %v108 = vmul.f32 %v96, %v106
    %v109 = vmul.f32 %v96, %v107
    %v110 = vmul.f32 %v100, %v106
    %v111 = vmul.f32 %v100, %v107
    %v112 = vadd.f32 %v90, %v108
    %v113 = vadd.f32 %v91, %v109
    %v114 = vadd.f32 %v92, %v110
    %v115 = vadd.f32 %v93, %v111
    %v116 = vmax.f32 %v112, 0.0
    %v117 = vmax.f32 %v113, 0.0
    %v118 = vmax.f32 %v114, 0.0
    %v119 = vmax.f32 %v115, 0.0
    %120 = vset.pattern.permute.xlu0 5
    %121 = vperm.xlu0 %120, %v12
    %v122 = vpop.permute.xlu0 %121
    %124 = vset.pattern.permute.xlu0 5
    %125 = vperm.xlu0 %124, %v13
    %v126 = vpop.permute.xlu0 %125
    %v128 = vmul.f32 %v116, %v122
    %v129 = vmul.f32 %v117, %v122
    %v130 = vmul.f32 %v118, %v126
    %v131 = vmul.f32 %v119, %v126
    %v132 = vadd.f32 %v128, %v130
    %v133 = vrot.slane %v132, 4
    %v134 = vadd.f32 %v132, %v133
    %v135 = vrot.slane %v134, 2
    %v136 = vadd.f32 %v134, %v135
    %v137 = vrot.slane %v136, 1
    %v138 = vadd.f32 %v136, %v137
    %v139 = vadd.f32 %v129, %v131
    %v140 = vrot.slane %v139, 4
    %v141 = vadd.f32 %v139, %v140
    %v142 = vrot.slane %v141, 2
    %v143 = vadd.f32 %v141, %v142
    %v144 = vrot.slane %v143, 1
    %v145 = vadd.f32 %v143, %v144
    %147 = vset.pattern.permute.xlu0 7
    %148 = vperm.xlu0 %147, %v14
    %v149 = vpop.permute.xlu0 %148
    %v151 = vadd.f32 %v138, %v149
    %v152 = vadd.f32 %v145, %v149
    %153 = vset.pattern.permute.xlu0 6
    %154 = vperm.xlu0 %153, %v12
    %v155 = vpop.permute.xlu0 %154
    %157 = vset.pattern.permute.xlu0 6
    %158 = vperm.xlu0 %157, %v13
    %v159 = vpop.permute.xlu0 %158
    %v161 = vmul.f32 %v116, %v155
    %v162 = vmul.f32 %v117, %v155
    %v163 = vmul.f32 %v118, %v159
    %v164 = vmul.f32 %v119, %v159
    %v165 = vadd.f32 %v161, %v163
    %v166 = vrot.slane %v165, 4
    %v167 = vadd.f32 %v165, %v166
    %v168 = vrot.slane %v167, 2
    %v169 = vadd.f32 %v167, %v168
    %v170 = vrot.slane %v169, 1
    %v171 = vadd.f32 %v169, %v170
    %v172 = vadd.f32 %v162, %v164
    %v173 = vrot.slane %v172, 4
    %v174 = vadd.f32 %v172, %v173
    %v175 = vrot.slane %v174, 2
    %v176 = vadd.f32 %v174, %v175
    %v177 = vrot.slane %v176, 1
    %v178 = vadd.f32 %v176, %v177
    %180 = vset.pattern.permute.xlu0 7
    %181 = vperm.xlu0 %180, %v15
    %v182 = vpop.permute.xlu0 %181
    %v184 = vadd.f32 %v171, %v182
    %v185 = vadd.f32 %v178, %v182
    %vm186 = vcmp.gt.f32.partialorder %v184, %v151
    %vm187 = vcmp.gt.f32.partialorder %v185, %v152
    %v188 = vsel %vm186, 1, 0
    %v189 = vsel %vm187, 1, 0
    %v190 = vrot.slane %v189, 7
    %vm191 = vcmask 1040384
    %v192 = vsel %vm191, %v188, %v190
    %v193 = vlaneseq
    %vm194 = vcmp.ge.s32.totalorder %v193, 0
    %vm195 = vcmp.lt.s32.totalorder %v193, 256
    %vm196 = vmand %vm194, %vm195
    %197 = vst.msk [vmem:[#allocation2] sm:$0x3] %vm196, %v192
    // Predicated region
    $region10: #{tpu_custom_call.1} parent=1 // pred_check
      _
    $region11: #{tpu_custom_call.1} parent=1 // pred_check_branch
      %199 = sbr.rel (0) target = $region13
    $region12: #{tpu_custom_call.1} parent=1 // pred_region
      %201 = vsyncadd [#allocation3], 0
      %s203 = sshll.u32 [#allocation2], 4
      %s204 = int_to_ptr.vmem [resolvable:$true] %s203
      %s205 = sshll.u32 %s2, 4
      %s206 = int_to_ptr.hbm [resolvable:$true] %s205
      %208 = dma.vmem_to_hbm [thread:$0]  %s204, 32, %s206, [#allocation3]
    $region13: #{tpu_custom_call.1} parent=1 // pred_fallthru
      _
    // Predicated region
    $region14: #{tpu_custom_call.1} parent=1 // pred_check
      _
    $region15: #{tpu_custom_call.1} parent=1 // pred_check_branch
      %210 = sbr.rel (0) target = $region17
    $region16: #{tpu_custom_call.1} parent=1 // pred_region
      %212 = dma.done [#allocation3], 32
    $region17: #{tpu_custom_call.1} parent=1 // pred_fallthru
      _
    %213 = vsyncpa [#allocation3], 1

</llo_original>
